<compile_context>
chip_gen: v5e
topology: v5e:2x2
jax: 0.10.0
libtpu: 0.0.40
codegen_flags: <defaults>
</compile_context>

<pallas_src>
import functools

import jax
import jax.numpy as jnp
from jax import lax
from jax.experimental import pallas as pl
from jax.experimental.pallas import tpu as pltpu

C_OUT = 32  # Conv1d out_channels in the PyTorch module


def _round_up(x, m):
    return -(-x // m) * m


def cnn_lstm_kernel(slab_ref, w0_ref, w1_ref, w2_ref, cb_ref,
                    wih_ref, whh_ref, b_ref, fcw_ref, fcb_ref,
                    out_ref, gx_ref, *, T, BB, H):
    """One batch block (BB rows) of the full forward pass.

    slab_ref: ((T+2)*BB, Cin)  zero-time-padded input, t-major (row = t*BB + b)
    w0/w1/w2: (Cin, 32)        conv taps (w_k multiplies x[t + k - 1])
    cb:       (1, 32)          conv bias
    wih:      (32, 4H)         LSTM input weights (PyTorch gate order i,f,g,o)
    whh:      (H, 4H)          LSTM recurrent weights
    b:        (1, 4H)          b_ih + b_hh
    fcw:      (1, H)           final Linear weight (row vector)
    fcb:      (1, 1)           final Linear bias
    out_ref:  (1, 1, BB)       lane-dense probability row for this block
    gx_ref:   (Tp*BB, 4H)      VMEM scratch: hoisted LSTM input projection
    """
    Tp = T // 2  # MaxPool1d(2) floor behavior: an odd trailing frame is dropped.

    slab = slab_ref[...]                                          # ((T+2)*BB, Cin)

    # 1) Conv1d(k=3, pad=1) + ReLU: three K=Cin matmuls over BB-row-shifted,
    #    8-row-aligned slices of the same slab (im2col never touches HBM).
    conv = jnp.maximum(
        jnp.dot(slab[0:T * BB], w0_ref[...], preferred_element_type=jnp.float32)
        + jnp.dot(slab[BB:(T + 1) * BB], w1_ref[...], preferred_element_type=jnp.float32)
        + jnp.dot(slab[2 * BB:(T + 2) * BB], w2_ref[...], preferred_element_type=jnp.float32)
        + cb_ref[...],
        0.0)                                                      # (T*BB, 32)

    # 2) MaxPool1d(kernel=2, stride=2) over time: one reshape + one max.
    conv3 = conv[:2 * Tp * BB].reshape(Tp, 2 * BB, C_OUT)
    pooled = jnp.maximum(conv3[:, :BB], conv3[:, BB:]).reshape(Tp * BB, C_OUT)

    # 3) Hoisted LSTM input projection + fused bias: ONE matmul for all steps,
    #    staged in VMEM scratch so the recurrence slices it with pl.ds.
    gx_ref[...] = (jnp.dot(pooled, wih_ref[...], preferred_element_type=jnp.float32)
                   + b_ref[...])                                  # (Tp*BB, 4H)

    # 4) Recurrence: only h @ whh is truly sequential (one MXU push per step).
    whh = whh_ref[...]

    def step(t, carry):
        h, c = carry
        row = pl.multiple_of(t * BB, 8)        # BB is a multiple of 8
        gates = (gx_ref[pl.ds(row, BB), :]
                 + jnp.dot(h, whh, preferred_element_type=jnp.float32))  # (BB, 4H)
        s = jax.nn.sigmoid(gates)              # one lane-dense EUP pass covers i, f, o
        g = jnp.tanh(gates[:, 2 * H:3 * H])
        c = s[:, H:2 * H] * c + s[:, 0:H] * g
        h = s[:, 3 * H:4 * H] * jnp.tanh(c)
        return h, c

    h0 = jnp.zeros((BB, H), jnp.float32)
    c0 = jnp.zeros((BB, H), jnp.float32)
    h, _ = lax.fori_loop(0, Tp, step, (h0, c0),
                         unroll=True if Tp <= 16 else 8)

    # 5) Linear(H -> 1) + sigmoid as a lane-dense (1, BB) row:
    #    fcw @ h^T via dot_general (same contraction structure as q @ k^T).
    logits = lax.dot_general(fcw_ref[...], h, (((1,), (1,)), ((), ())),
                             preferred_element_type=jnp.float32)  # (1, BB)
    out_ref[...] = jax.nn.sigmoid(logits + fcb_ref[...]).reshape(1, 1, BB)


def _vmem_estimate_bytes(BB, T, Cin, H):
    """Conservative per-block VMEM footprint (f32, double-buffered I/O)."""
    Tp = max(T // 2, 1)
    f = 4
    slab = (T + 2) * BB * Cin * f * 2
    conv = T * BB * C_OUT * f * 2
    pooled = Tp * BB * C_OUT * f
    gx = Tp * BB * 4 * H * f
    work = BB * (4 * H + 3 * H) * f
    weights = (3 * Cin * C_OUT + C_OUT + C_OUT * 4 * H + H * 4 * H
               + 4 * H + H + 1) * f * 2
    out = BB * f * 2
    return slab + conv + pooled + gx + work + weights + out


def _choose_batch_block(B, T, Cin, H, target_bb, budget_bytes):
    """Largest multiple-of-8 block <= target (and <= padded batch) fitting the budget."""
    BB = min(_round_up(max(B, 1), 8), _round_up(target_bb, 8))
    while BB > 8 and _vmem_estimate_bytes(BB, T, Cin, H) > budget_bytes:
        BB = max(8, ((BB // 2) // 8) * 8)
    return BB


def cnn_lstm_forward(x, params, *, batch_block=128):
    """x: (B, T, Cin) float32 (module input layout). Returns (B, 1) probabilities."""
    B, T, Cin = x.shape
    H = params["w_hh"].shape[1]
    Tp = T // 2

    # Batch block: as large as possible (MXU row utilization, fewer grid steps,
    # amortized recurrence latency) while staying inside a VMEM budget that is
    # comfortable on v7x (64 MiB physical, 32 MiB default scoped).
    BB = _choose_batch_block(B, T, Cin, H, batch_block, budget_bytes=20 * 2**20)
    nb = -(-B // BB)
    Bp = nb * BB
    # TODO(synk): for very long sequences additionally tile the time axis so the
    # conv / gates_x chunks (not just BB) bound the VMEM footprint.

    # ---- layout plumbing (1x-sized; the 3x im2col expansion happens in-kernel) ----
    xp = jnp.pad(x.astype(jnp.float32), ((0, Bp - B), (0, 0), (0, 0)))   # (Bp, T, Cin)
    xz = jnp.pad(xp, ((0, 0), (1, 1), (0, 0)))                           # (Bp, T+2, Cin)
    slab = (xz.reshape(nb, BB, T + 2, Cin)
              .transpose(0, 2, 1, 3)
              .reshape(nb * (T + 2) * BB, Cin))                          # t-major rows

    # Kernel-friendly weight layouts (conv tap k multiplies x[t + k - 1]).
    w0 = params["conv_w"][:, :, 0].T                                     # (Cin, 32)
    w1 = params["conv_w"][:, :, 1].T
    w2 = params["conv_w"][:, :, 2].T
    cb = params["conv_b"].reshape(1, C_OUT)
    wih = params["w_ih"].T                                               # (32, 4H)
    whh = params["w_hh"].T                                               # (H, 4H)
    b = (params["b_ih"] + params["b_hh"]).reshape(1, 4 * H)
    fcw = params["fc_w"].reshape(1, H)
    fcb = params["fc_b"].reshape(1, 1)

    est = _vmem_estimate_bytes(BB, T, Cin, H)
    vmem_limit = int(min(max(2 * est, 16 * 2**20), 48 * 2**20))

    kernel = functools.partial(cnn_lstm_kernel, T=T, BB=BB, H=H)
    resident = lambda a: pl.BlockSpec(a.shape, lambda i: (0, 0))         # resident weights

    out = pl.pallas_call(
        kernel,
        out_shape=jax.ShapeDtypeStruct((nb, 1, BB), jnp.float32),
        grid=(nb,),
        in_specs=[
            pl.BlockSpec(((T + 2) * BB, Cin), lambda i: (i, 0)),         # input slab block
            resident(w0), resident(w1), resident(w2), resident(cb),
            resident(wih), resident(whh), resident(b),
            resident(fcw), resident(fcb),
        ],
        out_specs=pl.BlockSpec((1, 1, BB), lambda i: (i, 0, 0)),         # lane-dense row
        scratch_shapes=[pltpu.VMEM((max(Tp, 1) * BB, 4 * H), jnp.float32)],
        compiler_params=pltpu.CompilerParams(
            dimension_semantics=("parallel",),       # v7x: 2 TCs split real batches
            vmem_limit_bytes=vmem_limit),
    )(slab, w0, w1, w2, cb, wih, whh, b, fcw, fcb)

    return out.reshape(Bp, 1)[:B]


def init_params(key, input_dim, hidden_dim):
    """Deterministic synthetic parameters with the exact PyTorch module shapes."""
    ks = jax.random.split(key, 7)
    k_conv = 1.0 / jnp.sqrt(input_dim * 3.0)
    conv_w = jax.random.uniform(ks[0], (C_OUT, input_dim, 3), jnp.float32, -k_conv, k_conv)
    conv_b = jax.random.uniform(ks[1], (C_OUT,), jnp.float32, -k_conv, k_conv)
    k_lstm = 1.0 / jnp.sqrt(float(hidden_dim))
    w_ih = jax.random.uniform(ks[2], (4 * hidden_dim, C_OUT), jnp.float32, -k_lstm, k_lstm)
    w_hh = jax.random.uniform(ks[3], (4 * hidden_dim, hidden_dim), jnp.float32, -k_lstm, k_lstm)
    b_ih = jax.random.uniform(ks[4], (4 * hidden_dim,), jnp.float32, -k_lstm, k_lstm)
    b_hh = jax.random.uniform(ks[5], (4 * hidden_dim,), jnp.float32, -k_lstm, k_lstm)
    k_fc = 1.0 / jnp.sqrt(float(hidden_dim))
    fc_w = jax.random.uniform(ks[6], (1, hidden_dim), jnp.float32, -k_fc, k_fc)
    fc_b = jnp.zeros((1,), jnp.float32)
    return dict(conv_w=conv_w, conv_b=conv_b, w_ih=w_ih, w_hh=w_hh,
                b_ih=b_ih, b_hh=b_hh, fc_w=fc_w, fc_b=fc_b)


def reference_forward(x, params):
    """Pure-JAX reference mirroring the PyTorch forward pass."""
    B, T, Cin = x.shape
    H = params["w_hh"].shape[1]
    w0 = params["conv_w"][:, :, 0].T
    w1 = params["conv_w"][:, :, 1].T
    w2 = params["conv_w"][:, :, 2].T
    xp = jnp.pad(x, ((0, 0), (1, 1), (0, 0)))
    y = (xp[:, :-2] @ w0 + xp[:, 1:-1] @ w1 + xp[:, 2:] @ w2
         + params["conv_b"][None, None, :])
    y = jnp.maximum(y, 0.0)
    Tp = T // 2
    y = jnp.maximum(y[:, 0:2 * Tp:2], y[:, 1:2 * Tp:2])
    wih = params["w_ih"].T
    whh = params["w_hh"].T
    b = (params["b_ih"] + params["b_hh"])[None, :]
    h = jnp.zeros((B, H), jnp.float32)
    c = jnp.zeros((B, H), jnp.float32)
    for t in range(Tp):
        gates = y[:, t] @ wih + h @ whh + b
        i = jax.nn.sigmoid(gates[:, 0:H])
        f = jax.nn.sigmoid(gates[:, H:2 * H])
        g = jnp.tanh(gates[:, 2 * H:3 * H])
        o = jax.nn.sigmoid(gates[:, 3 * H:4 * H])
        c = f * c + i * g
        h = o * jnp.tanh(c)
    return jax.nn.sigmoid(h @ params["fc_w"].T + params["fc_b"][None, :])


if __name__ == "__main__":
    B, T, INPUT_DIM, HIDDEN_DIM = 2, 8, 4, 32

    key = jax.random.PRNGKey(0)
    k_x, k_p = jax.random.split(key)
    x = jax.random.normal(k_x, (B, T, INPUT_DIM), jnp.float32)
    params = init_params(k_p, INPUT_DIM, HIDDEN_DIM)

    out = cnn_lstm_forward(x, params)
    out = jax.block_until_ready(out)

    ref = reference_forward(x, params)
    assert out.shape == (B, 1)
    assert jnp.allclose(out, ref, atol=2e-5, rtol=2e-5), (out, ref)

    print("KERNEL_OK")
</pallas_src>

<mosaic_0001>
module attributes {stable_mosaic.version = 11 : i64} {
  func.func @cnn_lstm_kernel(%arg0: i32, %arg1: memref<80x4xf32, #tpu.memory_space<vmem>>, %arg2: memref<4x32xf32, #tpu.memory_space<vmem>>, %arg3: memref<4x32xf32, #tpu.memory_space<vmem>>, %arg4: memref<4x32xf32, #tpu.memory_space<vmem>>, %arg5: memref<1x32xf32, #tpu.memory_space<vmem>>, %arg6: memref<32x128xf32, #tpu.memory_space<vmem>>, %arg7: memref<32x128xf32, #tpu.memory_space<vmem>>, %arg8: memref<1x128xf32, #tpu.memory_space<vmem>>, %arg9: memref<1x32xf32, #tpu.memory_space<vmem>>, %arg10: memref<1x1xf32, #tpu.memory_space<vmem>>, %arg11: memref<1x1x8xf32, #tpu.memory_space<vmem>>, %arg12: memref<32x128xf32, #tpu.memory_space<vmem>>) attributes {dimension_semantics = [#tpu.dimension_semantics<parallel>], iteration_bounds = array<i64: 1>, scalar_prefetch = 0 : i64, scratch_operands = 1 : i64, tpu.core_type = #tpu.core_type<tc>, window_params = [{transform_indices = @transform_0, window_bounds = array<i64: 80, 4>}, {pipeline_mode = #tpu.pipeline_mode<synchronous>, transform_indices = @transform_1, window_bounds = array<i64: 4, 32>}, {pipeline_mode = #tpu.pipeline_mode<synchronous>, transform_indices = @transform_2, window_bounds = array<i64: 4, 32>}, {pipeline_mode = #tpu.pipeline_mode<synchronous>, transform_indices = @transform_3, window_bounds = array<i64: 4, 32>}, {pipeline_mode = #tpu.pipeline_mode<synchronous>, transform_indices = @transform_4, window_bounds = array<i64: 1, 32>}, {pipeline_mode = #tpu.pipeline_mode<synchronous>, transform_indices = @transform_5, window_bounds = array<i64: 32, 128>}, {pipeline_mode = #tpu.pipeline_mode<synchronous>, transform_indices = @transform_6, window_bounds = array<i64: 32, 128>}, {pipeline_mode = #tpu.pipeline_mode<synchronous>, transform_indices = @transform_7, window_bounds = array<i64: 1, 128>}, {pipeline_mode = #tpu.pipeline_mode<synchronous>, transform_indices = @transform_8, window_bounds = array<i64: 1, 32>}, {pipeline_mode = #tpu.pipeline_mode<synchronous>, transform_indices = @transform_9, window_bounds = array<i64: 1, 1>}, {transform_indices = @transform_10, window_bounds = array<i64: 1, 1, 8>}]} {
    %c0 = arith.constant 0 : index
    %c0_0 = arith.constant 0 : index
    %0 = vector.load %arg1[%c0, %c0_0] : memref<80x4xf32, #tpu.memory_space<vmem>>, vector<80x4xf32>
    %1 = vector.extract_strided_slice %0 {offsets = [0, 0], sizes = [64, 4], strides = [1, 1]} : vector<80x4xf32> to vector<64x4xf32>
    %c0_1 = arith.constant 0 : index
    %c0_2 = arith.constant 0 : index
    %2 = vector.load %arg2[%c0_1, %c0_2] : memref<4x32xf32, #tpu.memory_space<vmem>>, vector<4x32xf32>
    %cst = arith.constant dense<0.000000e+00> : vector<64x32xf32>
    %3 = tpu.matmul %1, %2, %cst {dimension_numbers = #tpu.dot_dimension_numbers<[1], [0], [0], [1], [0, 0, 1, 1], [], []>} : vector<64x4xf32>, vector<4x32xf32>, vector<64x32xf32> -> vector<64x32xf32>
    %4 = vector.extract_strided_slice %0 {offsets = [8, 0], sizes = [64, 4], strides = [1, 1]} : vector<80x4xf32> to vector<64x4xf32>
    %c0_3 = arith.constant 0 : index
    %c0_4 = arith.constant 0 : index
    %5 = vector.load %arg3[%c0_3, %c0_4] : memref<4x32xf32, #tpu.memory_space<vmem>>, vector<4x32xf32>
    %cst_5 = arith.constant dense<0.000000e+00> : vector<64x32xf32>
    %6 = tpu.matmul %4, %5, %cst_5 {dimension_numbers = #tpu.dot_dimension_numbers<[1], [0], [0], [1], [0, 0, 1, 1], [], []>} : vector<64x4xf32>, vector<4x32xf32>, vector<64x32xf32> -> vector<64x32xf32>
    %7 = arith.addf %3, %6 : vector<64x32xf32>
    %8 = vector.extract_strided_slice %0 {offsets = [16, 0], sizes = [64, 4], strides = [1, 1]} : vector<80x4xf32> to vector<64x4xf32>
    %c0_6 = arith.constant 0 : index
    %c0_7 = arith.constant 0 : index
    %9 = vector.load %arg4[%c0_6, %c0_7] : memref<4x32xf32, #tpu.memory_space<vmem>>, vector<4x32xf32>
    %cst_8 = arith.constant dense<0.000000e+00> : vector<64x32xf32>
    %10 = tpu.matmul %8, %9, %cst_8 {dimension_numbers = #tpu.dot_dimension_numbers<[1], [0], [0], [1], [0, 0, 1, 1], [], []>} : vector<64x4xf32>, vector<4x32xf32>, vector<64x32xf32> -> vector<64x32xf32>
    %11 = arith.addf %7, %10 : vector<64x32xf32>
    %c0_9 = arith.constant 0 : index
    %c0_10 = arith.constant 0 : index
    %12 = vector.load %arg5[%c0_9, %c0_10] : memref<1x32xf32, #tpu.memory_space<vmem>>, vector<1x32xf32>
    %13 = vector.broadcast %12 : vector<1x32xf32> to vector<64x32xf32>
    %14 = arith.addf %11, %13 : vector<64x32xf32>
    %cst_11 = arith.constant 0.000000e+00 : f32
    %15 = vector.broadcast %cst_11 : f32 to vector<64x32xf32>
    %16 = arith.maximumf %14, %15 : vector<64x32xf32>
    %17 = vector.shape_cast %16 : vector<64x32xf32> to vector<4x16x32xf32>
    %18 = vector.extract_strided_slice %17 {offsets = [0, 0, 0], sizes = [4, 8, 32], strides = [1, 1, 1]} : vector<4x16x32xf32> to vector<4x8x32xf32>
    %19 = vector.extract_strided_slice %17 {offsets = [0, 8, 0], sizes = [4, 8, 32], strides = [1, 1, 1]} : vector<4x16x32xf32> to vector<4x8x32xf32>
    %20 = arith.maximumf %18, %19 : vector<4x8x32xf32>
    %21 = vector.shape_cast %20 : vector<4x8x32xf32> to vector<32x32xf32>
    %c0_12 = arith.constant 0 : index
    %c0_13 = arith.constant 0 : index
    %22 = vector.load %arg6[%c0_12, %c0_13] : memref<32x128xf32, #tpu.memory_space<vmem>>, vector<32x128xf32>
    %cst_14 = arith.constant dense<0.000000e+00> : vector<32x128xf32>
    %23 = tpu.matmul %21, %22, %cst_14 {dimension_numbers = #tpu.dot_dimension_numbers<[1], [0], [0], [1], [0, 0, 1, 1], [], []>} : vector<32x32xf32>, vector<32x128xf32>, vector<32x128xf32> -> vector<32x128xf32>
    %c0_15 = arith.constant 0 : index
    %c0_16 = arith.constant 0 : index
    %24 = vector.load %arg8[%c0_15, %c0_16] : memref<1x128xf32, #tpu.memory_space<vmem>>, vector<1x128xf32>
    %25 = vector.broadcast %24 : vector<1x128xf32> to vector<32x128xf32>
    %26 = arith.addf %23, %25 : vector<32x128xf32>
    %c0_17 = arith.constant 0 : index
    %c0_18 = arith.constant 0 : index
    %27 = vector.load %arg12[%c0_17, %c0_18] : memref<32x128xf32, #tpu.memory_space<vmem>>, vector<32x128xf32>
    tpu.vector_store %arg12[%c0_17, %c0_18], %26 {strides = array<i32>} : memref<32x128xf32, #tpu.memory_space<vmem>>, vector<32x128xf32>,
    %c0_19 = arith.constant 0 : index
    %c0_20 = arith.constant 0 : index
    %28 = vector.load %arg7[%c0_19, %c0_20] : memref<32x128xf32, #tpu.memory_space<vmem>>, vector<32x128xf32>
    %cst_21 = arith.constant 0.000000e+00 : f32
    %29 = vector.broadcast %cst_21 : f32 to vector<8x32xf32>
    %cst_22 = arith.constant 0.000000e+00 : f32
    %30 = vector.broadcast %cst_22 : f32 to vector<8x32xf32>
    %c0_i32 = arith.constant 0 : i32
    %c8_i32 = arith.constant 8 : i32
    %31 = arith.muli %c0_i32, %c8_i32 : i32
    %32 = tpu.assume_multiple %31, 8 : i32
    %33 = arith.index_cast %32 : i32 to index
    %c0_23 = arith.constant 0 : index
    %34 = vector.load %arg12[%33, %c0_23] : memref<32x128xf32, #tpu.memory_space<vmem>>, vector<8x128xf32>
    %cst_24 = arith.constant dense<0.000000e+00> : vector<8x128xf32>
    %35 = tpu.matmul %29, %28, %cst_24 {dimension_numbers = #tpu.dot_dimension_numbers<[1], [0], [0], [1], [0, 0, 1, 1], [], []>} : vector<8x32xf32>, vector<32x128xf32>, vector<8x128xf32> -> vector<8x128xf32>
    %36 = arith.addf %34, %35 : vector<8x128xf32>
    %37 = arith.negf %36 : vector<8x128xf32>
    %38 = math.exp %37 : vector<8x128xf32>
    %cst_25 = arith.constant 1.000000e+00 : f32
    %39 = vector.broadcast %cst_25 : f32 to vector<8x128xf32>
    %40 = arith.addf %39, %38 : vector<8x128xf32>
    %41 = arith.divf %39, %40 : vector<8x128xf32>
    %42 = vector.extract_strided_slice %36 {offsets = [0, 64], sizes = [8, 32], strides = [1, 1]} : vector<8x128xf32> to vector<8x32xf32>
    %43 = math.tanh %42 : vector<8x32xf32>
    %44 = vector.extract_strided_slice %41 {offsets = [0, 32], sizes = [8, 32], strides = [1, 1]} : vector<8x128xf32> to vector<8x32xf32>
    %45 = arith.mulf %44, %30 : vector<8x32xf32>
    %46 = vector.extract_strided_slice %41 {offsets = [0, 0], sizes = [8, 32], strides = [1, 1]} : vector<8x128xf32> to vector<8x32xf32>
    %47 = arith.mulf %46, %43 : vector<8x32xf32>
    %48 = arith.addf %45, %47 : vector<8x32xf32>
    %49 = vector.extract_strided_slice %41 {offsets = [0, 96], sizes = [8, 32], strides = [1, 1]} : vector<8x128xf32> to vector<8x32xf32>
    %50 = math.tanh %48 : vector<8x32xf32>
    %51 = arith.mulf %49, %50 : vector<8x32xf32>
    %c1_i32 = arith.constant 1 : i32
    %c8_i32_26 = arith.constant 8 : i32
    %52 = arith.muli %c1_i32, %c8_i32_26 : i32
    %53 = tpu.assume_multiple %52, 8 : i32
    %54 = arith.index_cast %53 : i32 to index
    %c0_27 = arith.constant 0 : index
    %55 = vector.load %arg12[%54, %c0_27] : memref<32x128xf32, #tpu.memory_space<vmem>>, vector<8x128xf32>
    %cst_28 = arith.constant dense<0.000000e+00> : vector<8x128xf32>
    %56 = tpu.matmul %51, %28, %cst_28 {dimension_numbers = #tpu.dot_dimension_numbers<[1], [0], [0], [1], [0, 0, 1, 1], [], []>} : vector<8x32xf32>, vector<32x128xf32>, vector<8x128xf32> -> vector<8x128xf32>
    %57 = arith.addf %55, %56 : vector<8x128xf32>
    %58 = arith.negf %57 : vector<8x128xf32>
    %59 = math.exp %58 : vector<8x128xf32>
    %cst_29 = arith.constant 1.000000e+00 : f32
    %60 = vector.broadcast %cst_29 : f32 to vector<8x128xf32>
    %61 = arith.addf %60, %59 : vector<8x128xf32>
    %62 = arith.divf %60, %61 : vector<8x128xf32>
    %63 = vector.extract_strided_slice %57 {offsets = [0, 64], sizes = [8, 32], strides = [1, 1]} : vector<8x128xf32> to vector<8x32xf32>
    %64 = math.tanh %63 : vector<8x32xf32>
    %65 = vector.extract_strided_slice %62 {offsets = [0, 32], sizes = [8, 32], strides = [1, 1]} : vector<8x128xf32> to vector<8x32xf32>
    %66 = arith.mulf %65, %48 : vector<8x32xf32>
    %67 = vector.extract_strided_slice %62 {offsets = [0, 0], sizes = [8, 32], strides = [1, 1]} : vector<8x128xf32> to vector<8x32xf32>
    %68 = arith.mulf %67, %64 : vector<8x32xf32>
    %69 = arith.addf %66, %68 : vector<8x32xf32>
    %70 = vector.extract_strided_slice %62 {offsets = [0, 96], sizes = [8, 32], strides = [1, 1]} : vector<8x128xf32> to vector<8x32xf32>
    %71 = math.tanh %69 : vector<8x32xf32>
    %72 = arith.mulf %70, %71 : vector<8x32xf32>
    %c2_i32 = arith.constant 2 : i32
    %c8_i32_30 = arith.constant 8 : i32
    %73 = arith.muli %c2_i32, %c8_i32_30 : i32
    %74 = tpu.assume_multiple %73, 8 : i32
    %75 = arith.index_cast %74 : i32 to index
    %c0_31 = arith.constant 0 : index
    %76 = vector.load %arg12[%75, %c0_31] : memref<32x128xf32, #tpu.memory_space<vmem>>, vector<8x128xf32>
    %cst_32 = arith.constant dense<0.000000e+00> : vector<8x128xf32>
    %77 = tpu.matmul %72, %28, %cst_32 {dimension_numbers = #tpu.dot_dimension_numbers<[1], [0], [0], [1], [0, 0, 1, 1], [], []>} : vector<8x32xf32>, vector<32x128xf32>, vector<8x128xf32> -> vector<8x128xf32>
    %78 = arith.addf %76, %77 : vector<8x128xf32>
    %79 = arith.negf %78 : vector<8x128xf32>
    %80 = math.exp %79 : vector<8x128xf32>
    %cst_33 = arith.constant 1.000000e+00 : f32
    %81 = vector.broadcast %cst_33 : f32 to vector<8x128xf32>
    %82 = arith.addf %81, %80 : vector<8x128xf32>
    %83 = arith.divf %81, %82 : vector<8x128xf32>
    %84 = vector.extract_strided_slice %78 {offsets = [0, 64], sizes = [8, 32], strides = [1, 1]} : vector<8x128xf32> to vector<8x32xf32>
    %85 = math.tanh %84 : vector<8x32xf32>
    %86 = vector.extract_strided_slice %83 {offsets = [0, 32], sizes = [8, 32], strides = [1, 1]} : vector<8x128xf32> to vector<8x32xf32>
    %87 = arith.mulf %86, %69 : vector<8x32xf32>
    %88 = vector.extract_strided_slice %83 {offsets = [0, 0], sizes = [8, 32], strides = [1, 1]} : vector<8x128xf32> to vector<8x32xf32>
    %89 = arith.mulf %88, %85 : vector<8x32xf32>
    %90 = arith.addf %87, %89 : vector<8x32xf32>
    %91 = vector.extract_strided_slice %83 {offsets = [0, 96], sizes = [8, 32], strides = [1, 1]} : vector<8x128xf32> to vector<8x32xf32>
    %92 = math.tanh %90 : vector<8x32xf32>
    %93 = arith.mulf %91, %92 : vector<8x32xf32>
    %c3_i32 = arith.constant 3 : i32
    %c8_i32_34 = arith.constant 8 : i32
    %94 = arith.muli %c3_i32, %c8_i32_34 : i32
    %95 = tpu.assume_multiple %94, 8 : i32
    %96 = arith.index_cast %95 : i32 to index
    %c0_35 = arith.constant 0 : index
    %97 = vector.load %arg12[%96, %c0_35] : memref<32x128xf32, #tpu.memory_space<vmem>>, vector<8x128xf32>
    %cst_36 = arith.constant dense<0.000000e+00> : vector<8x128xf32>
    %98 = tpu.matmul %93, %28, %cst_36 {dimension_numbers = #tpu.dot_dimension_numbers<[1], [0], [0], [1], [0, 0, 1, 1], [], []>} : vector<8x32xf32>, vector<32x128xf32>, vector<8x128xf32> -> vector<8x128xf32>
    %99 = arith.addf %97, %98 : vector<8x128xf32>
    %100 = arith.negf %99 : vector<8x128xf32>
    %101 = math.exp %100 : vector<8x128xf32>
    %cst_37 = arith.constant 1.000000e+00 : f32
    %102 = vector.broadcast %cst_37 : f32 to vector<8x128xf32>
    %103 = arith.addf %102, %101 : vector<8x128xf32>
    %104 = arith.divf %102, %103 : vector<8x128xf32>
    %105 = vector.extract_strided_slice %99 {offsets = [0, 64], sizes = [8, 32], strides = [1, 1]} : vector<8x128xf32> to vector<8x32xf32>
    %106 = math.tanh %105 : vector<8x32xf32>
    %107 = vector.extract_strided_slice %104 {offsets = [0, 32], sizes = [8, 32], strides = [1, 1]} : vector<8x128xf32> to vector<8x32xf32>
    %108 = arith.mulf %107, %90 : vector<8x32xf32>
    %109 = vector.extract_strided_slice %104 {offsets = [0, 0], sizes = [8, 32], strides = [1, 1]} : vector<8x128xf32> to vector<8x32xf32>
    %110 = arith.mulf %109, %106 : vector<8x32xf32>
    %111 = arith.addf %108, %110 : vector<8x32xf32>
    %112 = vector.extract_strided_slice %104 {offsets = [0, 96], sizes = [8, 32], strides = [1, 1]} : vector<8x128xf32> to vector<8x32xf32>
    %113 = math.tanh %111 : vector<8x32xf32>
    %114 = arith.mulf %112, %113 : vector<8x32xf32>
    %c4_i32 = arith.constant 4 : i32
    %c0_38 = arith.constant 0 : index
    %c0_39 = arith.constant 0 : index
    %115 = vector.load %arg9[%c0_38, %c0_39] : memref<1x32xf32, #tpu.memory_space<vmem>>, vector<1x32xf32>
    %cst_40 = arith.constant dense<0.000000e+00> : vector<1x8xf32>
    %116 = tpu.matmul %115, %114, %cst_40 {dimension_numbers = #tpu.dot_dimension_numbers<[1], [1], [0], [0], [0, 0, 1, 0], [], []>} : vector<1x32xf32>, vector<8x32xf32>, vector<1x8xf32> -> vector<1x8xf32>
    %c0_41 = arith.constant 0 : index
    %c0_42 = arith.constant 0 : index
    %117 = vector.load %arg10[%c0_41, %c0_42] : memref<1x1xf32, #tpu.memory_space<vmem>>, vector<1x1xf32>
    %118 = vector.broadcast %117 : vector<1x1xf32> to vector<1x8xf32>
    %119 = arith.addf %116, %118 : vector<1x8xf32>
    %120 = arith.negf %119 : vector<1x8xf32>
    %121 = math.exp %120 : vector<1x8xf32>
    %cst_43 = arith.constant 1.000000e+00 : f32
    %122 = vector.broadcast %cst_43 : f32 to vector<1x8xf32>
    %123 = arith.addf %122, %121 : vector<1x8xf32>
    %124 = arith.divf %122, %123 : vector<1x8xf32>
    %125 = vector.shape_cast %124 : vector<1x8xf32> to vector<1x1x8xf32>
    %c0_44 = arith.constant 0 : index
    %c0_45 = arith.constant 0 : index
    %c0_46 = arith.constant 0 : index
    %126 = vector.load %arg11[%c0_44, %c0_45, %c0_46] : memref<1x1x8xf32, #tpu.memory_space<vmem>>, vector<1x1x8xf32>
    tpu.vector_store %arg11[%c0_44, %c0_45, %c0_46], %125 {strides = array<i32>} : memref<1x1x8xf32, #tpu.memory_space<vmem>>, vector<1x1x8xf32>,
    return
  }
  func.func @transform_0(%arg0: i32) -> (i32, i32) {
    %c0_i32 = arith.constant 0 : i32
    %c0_i32_0 = arith.constant 0 : i32
    return %arg0, %c0_i32 : i32, i32
  }
  func.func @transform_1(%arg0: i32) -> (i32, i32) {
    %c0_i32 = arith.constant 0 : i32
    %c0_i32_0 = arith.constant 0 : i32
    %c0_i32_1 = arith.constant 0 : i32
    return %c0_i32, %c0_i32_0 : i32, i32
  }
  func.func @transform_2(%arg0: i32) -> (i32, i32) {
    %c0_i32 = arith.constant 0 : i32
    %c0_i32_0 = arith.constant 0 : i32
    %c0_i32_1 = arith.constant 0 : i32
    return %c0_i32, %c0_i32_0 : i32, i32
  }
  func.func @transform_3(%arg0: i32) -> (i32, i32) {
    %c0_i32 = arith.constant 0 : i32
    %c0_i32_0 = arith.constant 0 : i32
    %c0_i32_1 = arith.constant 0 : i32
    return %c0_i32, %c0_i32_0 : i32, i32
  }
  func.func @transform_4(%arg0: i32) -> (i32, i32) {
    %c0_i32 = arith.constant 0 : i32
    %c0_i32_0 = arith.constant 0 : i32
    %c0_i32_1 = arith.constant 0 : i32
    return %c0_i32, %c0_i32_0 : i32, i32
  }
  func.func @transform_5(%arg0: i32) -> (i32, i32) {
    %c0_i32 = arith.constant 0 : i32
    %c0_i32_0 = arith.constant 0 : i32
    %c0_i32_1 = arith.constant 0 : i32
    return %c0_i32, %c0_i32_0 : i32, i32
  }
  func.func @transform_6(%arg0: i32) -> (i32, i32) {
    %c0_i32 = arith.constant 0 : i32
    %c0_i32_0 = arith.constant 0 : i32
    %c0_i32_1 = arith.constant 0 : i32
    return %c0_i32, %c0_i32_0 : i32, i32
  }
  func.func @transform_7(%arg0: i32) -> (i32, i32) {
    %c0_i32 = arith.constant 0 : i32
    %c0_i32_0 = arith.constant 0 : i32
    %c0_i32_1 = arith.constant 0 : i32
    return %c0_i32, %c0_i32_0 : i32, i32
  }
  func.func @transform_8(%arg0: i32) -> (i32, i32) {
    %c0_i32 = arith.constant 0 : i32
    %c0_i32_0 = arith.constant 0 : i32
    %c0_i32_1 = arith.constant 0 : i32
    return %c0_i32, %c0_i32_0 : i32, i32
  }
  func.func @transform_9(%arg0: i32) -> (i32, i32) {
    %c0_i32 = arith.constant 0 : i32
    %c0_i32_0 = arith.constant 0 : i32
    %c0_i32_1 = arith.constant 0 : i32
    return %c0_i32, %c0_i32_0 : i32, i32
  }
  func.func @transform_10(%arg0: i32) -> (i32, i32, i32) {
    %c0_i32 = arith.constant 0 : i32
    %c0_i32_0 = arith.constant 0 : i32
    %c0_i32_1 = arith.constant 0 : i32
    return %arg0, %c0_i32, %c0_i32_0 : i32, i32, i32
  }
}

</mosaic_0001>

<llo_original>
// kernel: tpu_custom_call.1
$region0: #{tpu_custom_call.1}
  #allocation0 [shape = 'u32[]', space=smem, size = 0x4, offset = 0x4, fixed_abs, tag = 'smem constant byte address 0x4 - core index']
  #allocation1 [shape = 'u32[72,128]{1,0:T(1,128)}', space=vmem, size = 0x9000, scoped, tag = 'internal scratch']
  #allocation2 [shape = 'f32[32,128]{1,0:T(8,128)}', space=vmem, size = 0x4000, scoped, tag = 'scratch operand']
  #allocation3 [shape = 'f32[1,1]{1,0:T(1,128)S(1)}', space=vmem, size = 0x200, scoped, tag = 'scoped memory for tpu_custom_call.1']
  %s0 = inlined_call_operand.vmem [shape: f32[80,4], index: 0, kind: input, shape index: {}]
  %s1 = inlined_call_operand.vmem [shape: f32[4,32], index: 1, kind: input, shape index: {}]
  %s2 = inlined_call_operand.vmem [shape: f32[4,32], index: 2, kind: input, shape index: {}]
  %s3 = inlined_call_operand.vmem [shape: f32[4,32], index: 3, kind: input, shape index: {}]
  %s4 = inlined_call_operand.vmem [shape: f32[1,32], index: 4, kind: input, shape index: {}]
  %s5 = inlined_call_operand.vmem [shape: f32[32,128], index: 5, kind: input, shape index: {}]
  %s6 = inlined_call_operand.vmem [shape: f32[32,128], index: 6, kind: input, shape index: {}]
  %s7 = inlined_call_operand.vmem [shape: f32[1,128], index: 7, kind: input, shape index: {}]
  %s8 = inlined_call_operand.vmem [shape: f32[1,32], index: 8, kind: input, shape index: {}]
  %s9 = inlined_call_operand.<no memory space> [shape: f32[1,1], index: 9, kind: input, shape index: {}]
  %s10 = inlined_call_operand.hbm [shape: f32[1,1,8], index: 10, kind: output, shape index: {}]
  %s11 = sld [smem:[#allocation0]]
  $region50: #{tpu_custom_call.1} parent=0
    _
  %s13 = ssub.s32 1, %s11
  %s14 = scalar_select 0, %s13, %s11
  %v15 = vstv %s9
  %16 = vst [vmem:[#allocation3] sm:$0x1] %v15
  $region1: #{tpu_custom_call.1} parent=0
    #allocation4 [shape = 'u8[512]{0}', space=vmem, size = 0x400, scoped, tag = 'output window, operand 0, single buffered']
    #allocation5 [shape = 's32[1]{0}', space=sflag, size = 0x4, scoped, tag = 'scoped memory for tpu_custom_call.1']
    %17 = vsyncpa [#allocation5], 0
    // Predicated region
    $region2: #{tpu_custom_call.1} parent=1 // pred_check
      _
    $region3: #{tpu_custom_call.1} parent=1 // pred_check_branch
      %19 = sbr.rel (0) target = $region5
    $region4: #{tpu_custom_call.1} parent=1 // pred_region
      _
    $region5: #{tpu_custom_call.1} parent=1 // pred_fallthru
      _
    // Predicated region
    $region6: #{tpu_custom_call.1} parent=1 // pred_check
      _
    $region7: #{tpu_custom_call.1} parent=1 // pred_check_branch
      %21 = sbr.rel (0) target = $region9
    $region8: #{tpu_custom_call.1} parent=1 // pred_region
      _
    $region9: #{tpu_custom_call.1} parent=1 // pred_fallthru
      _
    // Predicated region
    $region10: #{tpu_custom_call.1} parent=1 // pred_check
      _
    $region11: #{tpu_custom_call.1} parent=1 // pred_check_branch
      %23 = sbr.rel (0) target = $region13
    $region12: #{tpu_custom_call.1} parent=1 // pred_region
      _
    $region13: #{tpu_custom_call.1} parent=1 // pred_fallthru
      _
    // Predicated region
    $region14: #{tpu_custom_call.1} parent=1 // pred_check
      _
    $region15: #{tpu_custom_call.1} parent=1 // pred_check_branch
      %25 = sbr.rel (0) target = $region17
    $region16: #{tpu_custom_call.1} parent=1 // pred_region
      _
    $region17: #{tpu_custom_call.1} parent=1 // pred_fallthru
      _
    // Predicated region
    $region18: #{tpu_custom_call.1} parent=1 // pred_check
      _
    $region19: #{tpu_custom_call.1} parent=1 // pred_check_branch
      %27 = sbr.rel (0) target = $region21
    $region20: #{tpu_custom_call.1} parent=1 // pred_region
      _
    $region21: #{tpu_custom_call.1} parent=1 // pred_fallthru
      _
    // Predicated region
    $region22: #{tpu_custom_call.1} parent=1 // pred_check
      _
    $region23: #{tpu_custom_call.1} parent=1 // pred_check_branch
      %29 = sbr.rel (0) target = $region25
    $region24: #{tpu_custom_call.1} parent=1 // pred_region
      _
    $region25: #{tpu_custom_call.1} parent=1 // pred_fallthru
      _
    // Predicated region
    $region26: #{tpu_custom_call.1} parent=1 // pred_check
      _
    $region27: #{tpu_custom_call.1} parent=1 // pred_check_branch
      %31 = sbr.rel (0) target = $region29
    $region28: #{tpu_custom_call.1} parent=1 // pred_region
      _
    $region29: #{tpu_custom_call.1} parent=1 // pred_fallthru
      _
    // Predicated region
    $region30: #{tpu_custom_call.1} parent=1 // pred_check
      _
    $region31: #{tpu_custom_call.1} parent=1 // pred_check_branch
      %33 = sbr.rel (0) target = $region33
    $region32: #{tpu_custom_call.1} parent=1 // pred_region
      _
    $region33: #{tpu_custom_call.1} parent=1 // pred_fallthru
      _
    // Predicated region
    $region34: #{tpu_custom_call.1} parent=1 // pred_check
      _
    $region35: #{tpu_custom_call.1} parent=1 // pred_check_branch
      %35 = sbr.rel (0) target = $region37
    $region36: #{tpu_custom_call.1} parent=1 // pred_region
      _
    $region37: #{tpu_custom_call.1} parent=1 // pred_fallthru
      _
    // Predicated region
    $region38: #{tpu_custom_call.1} parent=1 // pred_check
      _
    $region39: #{tpu_custom_call.1} parent=1 // pred_check_branch
      %37 = sbr.rel (0) target = $region41
    $region40: #{tpu_custom_call.1} parent=1 // pred_region
      _
    $region41: #{tpu_custom_call.1} parent=1 // pred_fallthru
      _
    %v38 = vld [vmem:[%s0] sm:$0xff]
    %v39 = vld [vmem:[%s0 + $0x8] sm:$0xff]
    %v40 = vld [vmem:[%s0 + $0x10] sm:$0xff]
    %v41 = vld [vmem:[%s0 + $0x18] sm:$0xff]
    %v42 = vld [vmem:[%s0 + $0x20] sm:$0xff]
    %v43 = vld [vmem:[%s0 + $0x28] sm:$0xff]
    %v44 = vld [vmem:[%s0 + $0x30] sm:$0xff]
    %v45 = vld [vmem:[%s0 + $0x38] sm:$0xff]
    %v46 = vld [vmem:[%s0 + $0x40] sm:$0xff]
    %v47 = vld [vmem:[%s0 + $0x48] sm:$0xff]
    %v48 = vld [vmem:[%s1] sm:$0xf]
    %v49 = vld [vmem:[%s2] sm:$0xf]
    %vm50 = vcmask 31744
    %v52 = vsel %vm50, %v39, 0
    %v55 = vsel %vm50, %v40, 0
    %v58 = vsel %vm50, %v41, 0
    %v61 = vsel %vm50, %v42, 0
    %v64 = vsel %vm50, %v43, 0
    %v67 = vsel %vm50, %v44, 0
    %v70 = vsel %vm50, %v45, 0
    %v73 = vsel %vm50, %v46, 0
    %vm75 = vcmask 1043456
    %v77 = vsel %vm75, %v49, 0
    %79 = vmatpush.msra.mxu0 0.0
    %80 = vmatpush.msra.mxu0 0.0
    %81 = vmatpush.msra.mxu0 0.0
    %82 = vmatpush.msra.mxu0 0.0
    %83 = vmatpush.msra.mxu0 0.0
    %84 = vmatpush.msra.mxu0 0.0
    %85 = vmatpush.msra.mxu0 0.0
    %86 = vmatpush.msra.mxu0 0.0
    %87 = vmatpush.msra.mxu0 0.0
    %88 = vmatpush.msra.mxu0 0.0
    %89 = vmatpush.msra.mxu0 0.0
    %90 = vmatpush.msra.mxu0 0.0
    %91 = vmatpush.msra.mxu0 0.0
    %92 = vmatpush.msra.mxu0 0.0
    %93 = vmatpush.msra.mxu0 0.0
    %94 = vmatpush.msra.mxu0 %v77
    %95 = vmatmul.f32.gmra.mxu0 %v52
    %v96 = vpop.f32.mrf.mxu0
    %v97 = vadd.f32 0.0, %v96
    %98 = vmatmul.f32.gmra.mxu0 %v55
    %v99 = vpop.f32.mrf.mxu0
    %v100 = vadd.f32 0.0, %v99
    %101 = vmatmul.f32.gmra.mxu0 %v58
    %v102 = vpop.f32.mrf.mxu0
    %v103 = vadd.f32 0.0, %v102
    %104 = vmatmul.f32.gmra.mxu0 %v61
    %v105 = vpop.f32.mrf.mxu0
    %v106 = vadd.f32 0.0, %v105
    %107 = vmatmul.f32.gmra.mxu0 %v64
    %v108 = vpop.f32.mrf.mxu0
    %v109 = vadd.f32 0.0, %v108
    %110 = vmatmul.f32.gmra.mxu0 %v67
    %v111 = vpop.f32.mrf.mxu0
    %v112 = vadd.f32 0.0, %v111
    %113 = vmatmul.f32.gmra.mxu0 %v70
    %v114 = vpop.f32.mrf.mxu0
    %v115 = vadd.f32 0.0, %v114
    %116 = vmatmul.f32.gmra.mxu0 %v73
    %v117 = vpop.f32.mrf.mxu0
    %v118 = vadd.f32 0.0, %v117
    %119 = vdwg.mxu0
    %v121 = vsel %vm50, %v38, 0
    %v124 = vsel %vm75, %v48, 0
    %126 = vmatpush.msra.mxu0 0.0
    %127 = vmatpush.msra.mxu0 0.0
    %128 = vmatpush.msra.mxu0 0.0
    %129 = vmatpush.msra.mxu0 0.0
    %130 = vmatpush.msra.mxu0 0.0
    %131 = vmatpush.msra.mxu0 0.0
    %132 = vmatpush.msra.mxu0 0.0
    %133 = vmatpush.msra.mxu0 0.0
    %134 = vmatpush.msra.mxu0 0.0
    %135 = vmatpush.msra.mxu0 0.0
    %136 = vmatpush.msra.mxu0 0.0
    %137 = vmatpush.msra.mxu0 0.0
    %138 = vmatpush.msra.mxu0 0.0
    %139 = vmatpush.msra.mxu0 0.0
    %140 = vmatpush.msra.mxu0 0.0
    %141 = vmatpush.msra.mxu0 %v124
    %142 = vmatmul.f32.gmra.mxu0 %v121
    %v143 = vpop.f32.mrf.mxu0
    %v144 = vadd.f32 %v97, %v143
    %145 = vmatmul.f32.gmra.mxu0 %v52
    %v146 = vpop.f32.mrf.mxu0
    %v147 = vadd.f32 %v100, %v146
    %148 = vmatmul.f32.gmra.mxu0 %v55
    %v149 = vpop.f32.mrf.mxu0
    %v150 = vadd.f32 %v103, %v149
    %151 = vmatmul.f32.gmra.mxu0 %v58
    %v152 = vpop.f32.mrf.mxu0
    %v153 = vadd.f32 %v106, %v152
    %154 = vmatmul.f32.gmra.mxu0 %v61
    %v155 = vpop.f32.mrf.mxu0
    %v156 = vadd.f32 %v109, %v155
    %157 = vmatmul.f32.gmra.mxu0 %v64
    %v158 = vpop.f32.mrf.mxu0
    %v159 = vadd.f32 %v112, %v158
    %160 = vmatmul.f32.gmra.mxu0 %v67
    %v161 = vpop.f32.mrf.mxu0
    %v162 = vadd.f32 %v115, %v161
    %163 = vmatmul.f32.gmra.mxu0 %v70
    %v164 = vpop.f32.mrf.mxu0
    %v165 = vadd.f32 %v118, %v164
    %166 = vdwg.mxu0
    %v167 = vld [vmem:[%s3] sm:$0xf]
    %v169 = vsel %vm50, %v47, 0
    %v172 = vsel %vm75, %v167, 0
    %174 = vmatpush.msra.mxu0 0.0
    %175 = vmatpush.msra.mxu0 0.0
    %176 = vmatpush.msra.mxu0 0.0
    %177 = vmatpush.msra.mxu0 0.0
    %178 = vmatpush.msra.mxu0 0.0
    %179 = vmatpush.msra.mxu0 0.0
    %180 = vmatpush.msra.mxu0 0.0
    %181 = vmatpush.msra.mxu0 0.0
    %182 = vmatpush.msra.mxu0 0.0
    %183 = vmatpush.msra.mxu0 0.0
    %184 = vmatpush.msra.mxu0 0.0
    %185 = vmatpush.msra.mxu0 0.0
    %186 = vmatpush.msra.mxu0 0.0
    %187 = vmatpush.msra.mxu0 0.0
    %188 = vmatpush.msra.mxu0 0.0
    %189 = vmatpush.msra.mxu0 %v172
    %190 = vmatmul.f32.gmra.mxu0 %v55
    %v191 = vpop.f32.mrf.mxu0
    %v192 = vadd.f32 0.0, %v191
    %193 = vmatmul.f32.gmra.mxu0 %v58
    %v194 = vpop.f32.mrf.mxu0
    %v195 = vadd.f32 0.0, %v194
    %196 = vmatmul.f32.gmra.mxu0 %v61
    %v197 = vpop.f32.mrf.mxu0
    %v198 = vadd.f32 0.0, %v197
    %199 = vmatmul.f32.gmra.mxu0 %v64
    %v200 = vpop.f32.mrf.mxu0
    %v201 = vadd.f32 0.0, %v200
    %202 = vmatmul.f32.gmra.mxu0 %v67
    %v203 = vpop.f32.mrf.mxu0
    %v204 = vadd.f32 0.0, %v203
    %205 = vmatmul.f32.gmra.mxu0 %v70
    %v206 = vpop.f32.mrf.mxu0
    %v207 = vadd.f32 0.0, %v206
    %208 = vmatmul.f32.gmra.mxu0 %v73
    %v209 = vpop.f32.mrf.mxu0
    %v210 = vadd.f32 0.0, %v209
    %211 = vmatmul.f32.gmra.mxu0 %v169
    %v212 = vpop.f32.mrf.mxu0
    %v213 = vadd.f32 0.0, %v212
    %214 = vdwg.mxu0
    %v215 = vadd.f32 %v144, %v192
    %v216 = vadd.f32 %v147, %v195
    %v217 = vadd.f32 %v150, %v198
    %v218 = vadd.f32 %v153, %v201
    %v219 = vadd.f32 %v156, %v204
    %v220 = vadd.f32 %v159, %v207
    %v221 = vadd.f32 %v162, %v210
    %v222 = vadd.f32 %v165, %v213
    %v223 = vld [vmem:[%s4] sm:$0x1]
    %v225 = vperm.slane %v223, 0
    %v227 = vadd.f32 %v215, %v225
    %v228 = vadd.f32 %v216, %v225
    %v229 = vadd.f32 %v217, %v225
    %v230 = vadd.f32 %v218, %v225
    %v231 = vadd.f32 %v219, %v225
    %v232 = vadd.f32 %v220, %v225
    %v233 = vadd.f32 %v221, %v225
    %v234 = vadd.f32 %v222, %v225
    %v235 = vmax.f32 %v227, 0.0
    %v236 = vmax.f32 %v228, 0.0
    %v237 = vmax.f32 %v229, 0.0
    %v238 = vmax.f32 %v230, 0.0
    %v239 = vmax.f32 %v231, 0.0
    %v240 = vmax.f32 %v232, 0.0
    %v241 = vmax.f32 %v233, 0.0
    %v242 = vmax.f32 %v234, 0.0
    %v243 = vmax.f32 %v235, %v236
    %v244 = vmax.f32 %v237, %v238
    %v245 = vmax.f32 %v239, %v240
    %v246 = vmax.f32 %v241, %v242
    %v247 = vld [vmem:[%s5] sm:$0xff]
    %v248 = vld [vmem:[%s5 + $0x8] sm:$0xff]
    %v249 = vld [vmem:[%s5 + $0x10] sm:$0xff]
    %v250 = vld [vmem:[%s5 + $0x18] sm:$0xff]
    %v251 = vld [vmem:[%s7] sm:$0x1]
    %v253 = vperm.slane %v251, 0
    %vm255 = vcmask 261120
    %v257 = vsel %vm255, %v243, 0
    %v260 = vsel %vm255, %v244, 0
    %v263 = vsel %vm255, %v245, 0
    %v266 = vsel %vm255, %v246, 0
    %268 = vmatpush.msra.mxu0 0.0
    %269 = vmatpush.msra.mxu0 0.0
    %270 = vmatpush.msra.mxu0 0.0
    %271 = vmatpush.msra.mxu0 0.0
    %272 = vmatpush.msra.mxu0 0.0
    %273 = vmatpush.msra.mxu0 0.0
    %274 = vmatpush.msra.mxu0 0.0
    %275 = vmatpush.msra.mxu0 0.0
    %276 = vmatpush.msra.mxu0 0.0
    %277 = vmatpush.msra.mxu0 0.0
    %278 = vmatpush.msra.mxu0 0.0
    %279 = vmatpush.msra.mxu0 0.0
    %280 = vmatpush.msra.mxu0 %v250
    %281 = vmatpush.msra.mxu0 %v249
    %282 = vmatpush.msra.mxu0 %v248
    %283 = vmatpush.msra.mxu0 %v247
    %284 = vmatmul.f32.gmra.mxu0 %v257
    %v285 = vpop.f32.mrf.mxu0
    %v286 = vadd.f32 %v253, %v285
    %287 = vmatmul.f32.gmra.mxu0 %v260
    %v288 = vpop.f32.mrf.mxu0
    %v289 = vadd.f32 %v253, %v288
    %290 = vmatmul.f32.gmra.mxu0 %v263
    %v291 = vpop.f32.mrf.mxu0
    %v292 = vadd.f32 %v253, %v291
    %293 = vmatmul.f32.gmra.mxu0 %v266
    %v294 = vpop.f32.mrf.mxu0
    %v295 = vadd.f32 %v253, %v294
    %296 = vdwg.mxu0
    %297 = vst [vmem:[#allocation2] sm:$0xff] %v286
    %298 = vst [vmem:[#allocation2 + $0x8] sm:$0xff] %v289
    %299 = vst [vmem:[#allocation2 + $0x10] sm:$0xff] %v292
    %300 = vst [vmem:[#allocation2 + $0x18] sm:$0xff] %v295
    %v301 = vld [vmem:[%s6] sm:$0xff]
    %v302 = vld [vmem:[%s6 + $0x8] sm:$0xff]
    %v303 = vld [vmem:[%s6 + $0x10] sm:$0xff]
    %v304 = vld [vmem:[%s6 + $0x18] sm:$0xff]
    %v305 = vld [vmem:[#allocation2] sm:$0xff]
    %v307 = vsel %vm255, 0.0, 0
    %309 = vmatpush.msra.mxu0 0.0
    %310 = vmatpush.msra.mxu0 0.0
    %311 = vmatpush.msra.mxu0 0.0
    %312 = vmatpush.msra.mxu0 0.0
    %313 = vmatpush.msra.mxu0 0.0
    %314 = vmatpush.msra.mxu0 0.0
    %315 = vmatpush.msra.mxu0 0.0
    %316 = vmatpush.msra.mxu0 0.0
    %317 = vmatpush.msra.mxu0 0.0
    %318 = vmatpush.msra.mxu0 0.0
    %319 = vmatpush.msra.mxu0 0.0
    %320 = vmatpush.msra.mxu0 0.0
    %321 = vmatpush.msra.mxu0 %v304
    %322 = vmatpush.msra.mxu0 %v303
    %323 = vmatpush.msra.mxu0 %v302
    %324 = vmatpush.msra.mxu0 %v301
    %325 = vmatmul.f32.gmra.mxu0 %v307
    %v326 = vpop.f32.mrf.mxu0
    %v327 = vadd.f32 0.0, %v326
    %328 = vdwg.mxu0
    %v329 = vadd.f32 %v305, %v327
    %v330 = vxor.u32 %v329, 2147483648
    %v331 = vmul.f32 %v330, 1.442695
    %v332 = vpow.pop %v331
    %v333 = vadd.f32 %v332, 1.0
    %v334 = vrcp.pop %v333
    %v335 = vmul.f32 %v333, %v334
    %v336 = vsub.f32 1.0, %v335
    %v337 = vmul.f32 %v334, %v336
    %v338 = vadd.f32 %v334, %v337
    %vm339 = vweird.f32 %v333
    %vm340 = vweird.f32 %v334
    %vm341 = vmor %vm339, %vm340
    %v342 = vsel %vm341, %v334, %v338
    %v343 = vand.u32 2147483647, %v333
    %vm344 = vcmp.eq.f32.partialorder %v343, 8.507059e+37
    %v345 = vand.u32 %v333, 2147483648
    %v346 = vor.u32 1.1754944e-38, %v345
    %v347 = vsel %vm344, %v346, %v342
    %v348 = vmul.f32 1.0, %v347
    %v349 = vtanh.pop %v329
    %v350 = vmul.f32 %v348, 0.0
    %352 = vrot.lane.b32.xlu0 %v349, 64
    %v353 = vpop.permute.xlu0 %352
    %v355 = vmul.f32 %v348, %v353
    %357 = vrot.lane.b32.xlu0 %v355, 32
    %v358 = vpop.permute.xlu0 %357
    %v360 = vadd.f32 %v350, %v358
    %v361 = vtanh.pop %v360
    %363 = vrot.lane.b32.xlu0 %v361, 64
    %v364 = vpop.permute.xlu0 %363
    %v366 = vmul.f32 %v348, %v364
    %s367 = scalar_lea.vmem [#allocation2], 8
    %v368 = vld [vmem:[%s367] sm:$0xff]
    %370 = vrot.lane.b32.xlu0 %v366, 32
    %v371 = vpop.permute.xlu0 %370
    %v372 = vsel %vm255, %v371, 0
    %374 = vmatpush.msra.mxu0 0.0
    %375 = vmatpush.msra.mxu0 0.0
    %376 = vmatpush.msra.mxu0 0.0
    %377 = vmatpush.msra.mxu0 0.0
    %378 = vmatpush.msra.mxu0 0.0
    %379 = vmatpush.msra.mxu0 0.0
    %380 = vmatpush.msra.mxu0 0.0
    %381 = vmatpush.msra.mxu0 0.0
    %382 = vmatpush.msra.mxu0 0.0
    %383 = vmatpush.msra.mxu0 0.0
    %384 = vmatpush.msra.mxu0 0.0
    %385 = vmatpush.msra.mxu0 0.0
    %386 = vmatpush.msra.mxu0 %v304
    %387 = vmatpush.msra.mxu0 %v303
    %388 = vmatpush.msra.mxu0 %v302
    %389 = vmatpush.msra.mxu0 %v301
    %390 = vmatmul.f32.gmra.mxu0 %v372
    %v391 = vpop.f32.mrf.mxu0
    %v392 = vadd.f32 0.0, %v391
    %393 = vdwg.mxu0
    %v394 = vadd.f32 %v368, %v392
    %v395 = vxor.u32 %v394, 2147483648
    %v396 = vmul.f32 %v395, 1.442695
    %v397 = vpow.pop %v396
    %v398 = vadd.f32 %v397, 1.0
    %v399 = vrcp.pop %v398
    %v400 = vmul.f32 %v398, %v399
    %v401 = vsub.f32 1.0, %v400
    %v402 = vmul.f32 %v399, %v401
    %v403 = vadd.f32 %v399, %v402
    %vm404 = vweird.f32 %v398
    %vm405 = vweird.f32 %v399
    %vm406 = vmor %vm404, %vm405
    %v407 = vsel %vm406, %v399, %v403
    %v408 = vand.u32 2147483647, %v398
    %vm409 = vcmp.eq.f32.partialorder %v408, 8.507059e+37
    %v410 = vand.u32 %v398, 2147483648
    %v411 = vor.u32 1.1754944e-38, %v410
    %v412 = vsel %vm409, %v411, %v407
    %v413 = vmul.f32 1.0, %v412
    %v414 = vtanh.pop %v394
    %v415 = vmul.f32 %v413, %v360
    %417 = vrot.lane.b32.xlu0 %v414, 64
    %v418 = vpop.permute.xlu0 %417
    %v420 = vmul.f32 %v413, %v418
    %422 = vrot.lane.b32.xlu0 %v420, 32
    %v423 = vpop.permute.xlu0 %422
    %v425 = vadd.f32 %v415, %v423
    %v426 = vtanh.pop %v425
    %428 = vrot.lane.b32.xlu0 %v426, 64
    %v429 = vpop.permute.xlu0 %428
    %v431 = vmul.f32 %v413, %v429
    %s432 = scalar_lea.vmem [#allocation2], 16
    %v433 = vld [vmem:[%s432] sm:$0xff]
    %435 = vrot.lane.b32.xlu0 %v431, 32
    %v436 = vpop.permute.xlu0 %435
    %v437 = vsel %vm255, %v436, 0
    %439 = vmatpush.msra.mxu0 0.0
    %440 = vmatpush.msra.mxu0 0.0
    %441 = vmatpush.msra.mxu0 0.0
    %442 = vmatpush.msra.mxu0 0.0
    %443 = vmatpush.msra.mxu0 0.0
    %444 = vmatpush.msra.mxu0 0.0
    %445 = vmatpush.msra.mxu0 0.0
    %446 = vmatpush.msra.mxu0 0.0
    %447 = vmatpush.msra.mxu0 0.0
    %448 = vmatpush.msra.mxu0 0.0
    %449 = vmatpush.msra.mxu0 0.0
    %450 = vmatpush.msra.mxu0 0.0
    %451 = vmatpush.msra.mxu0 %v304
    %452 = vmatpush.msra.mxu0 %v303
    %453 = vmatpush.msra.mxu0 %v302
    %454 = vmatpush.msra.mxu0 %v301
    %455 = vmatmul.f32.gmra.mxu0 %v437
    %v456 = vpop.f32.mrf.mxu0
    %v457 = vadd.f32 0.0, %v456
    %458 = vdwg.mxu0
    %v459 = vadd.f32 %v433, %v457
    %v460 = vxor.u32 %v459, 2147483648
    %v461 = vmul.f32 %v460, 1.442695
    %v462 = vpow.pop %v461
    %v463 = vadd.f32 %v462, 1.0
    %v464 = vrcp.pop %v463
    %v465 = vmul.f32 %v463, %v464
    %v466 = vsub.f32 1.0, %v465
    %v467 = vmul.f32 %v464, %v466
    %v468 = vadd.f32 %v464, %v467
    %vm469 = vweird.f32 %v463
    %vm470 = vweird.f32 %v464
    %vm471 = vmor %vm469, %vm470
    %v472 = vsel %vm471, %v464, %v468
    %v473 = vand.u32 2147483647, %v463
    %vm474 = vcmp.eq.f32.partialorder %v473, 8.507059e+37
    %v475 = vand.u32 %v463, 2147483648
    %v476 = vor.u32 1.1754944e-38, %v475
    %v477 = vsel %vm474, %v476, %v472
    %v478 = vmul.f32 1.0, %v477
    %v479 = vtanh.pop %v459
    %v480 = vmul.f32 %v478, %v425
    %482 = vrot.lane.b32.xlu0 %v479, 64
    %v483 = vpop.permute.xlu0 %482
    %v485 = vmul.f32 %v478, %v483
    %487 = vrot.lane.b32.xlu0 %v485, 32
    %v488 = vpop.permute.xlu0 %487
    %v490 = vadd.f32 %v480, %v488
    %v491 = vtanh.pop %v490
    %493 = vrot.lane.b32.xlu0 %v491, 64
    %v494 = vpop.permute.xlu0 %493
    %v496 = vmul.f32 %v478, %v494
    %s497 = scalar_lea.vmem [#allocation2], 24
    %v498 = vld [vmem:[%s497] sm:$0xff]
    %500 = vrot.lane.b32.xlu0 %v496, 32
    %v501 = vpop.permute.xlu0 %500
    %v502 = vsel %vm255, %v501, 0
    %504 = vmatpush.msra.mxu0 0.0
    %505 = vmatpush.msra.mxu0 0.0
    %506 = vmatpush.msra.mxu0 0.0
    %507 = vmatpush.msra.mxu0 0.0
    %508 = vmatpush.msra.mxu0 0.0
    %509 = vmatpush.msra.mxu0 0.0
    %510 = vmatpush.msra.mxu0 0.0
    %511 = vmatpush.msra.mxu0 0.0
    %512 = vmatpush.msra.mxu0 0.0
    %513 = vmatpush.msra.mxu0 0.0
    %514 = vmatpush.msra.mxu0 0.0
    %515 = vmatpush.msra.mxu0 0.0
    %516 = vmatpush.msra.mxu0 %v304
    %517 = vmatpush.msra.mxu0 %v303
    %518 = vmatpush.msra.mxu0 %v302
    %519 = vmatpush.msra.mxu0 %v301
    %520 = vmatmul.f32.gmra.mxu0 %v502
    %v521 = vpop.f32.mrf.mxu0
    %v522 = vadd.f32 0.0, %v521
    %523 = vdwg.mxu0
    %v524 = vadd.f32 %v498, %v522
    %v525 = vxor.u32 %v524, 2147483648
    %v526 = vmul.f32 %v525, 1.442695
    %v527 = vpow.pop %v526
    %v528 = vadd.f32 %v527, 1.0
    %v529 = vrcp.pop %v528
    %v530 = vmul.f32 %v528, %v529
    %v531 = vsub.f32 1.0, %v530
    %v532 = vmul.f32 %v529, %v531
    %v533 = vadd.f32 %v529, %v532
    %vm534 = vweird.f32 %v528
    %vm535 = vweird.f32 %v529
    %vm536 = vmor %vm534, %vm535
    %v537 = vsel %vm536, %v529, %v533
    %v538 = vand.u32 2147483647, %v528
    %vm539 = vcmp.eq.f32.partialorder %v538, 8.507059e+37
    %v540 = vand.u32 %v528, 2147483648
    %v541 = vor.u32 1.1754944e-38, %v540
    %v542 = vsel %vm539, %v541, %v537
    %v543 = vmul.f32 1.0, %v542
    %v544 = vtanh.pop %v524
    %v545 = vmul.f32 %v543, %v490
    %547 = vrot.lane.b32.xlu0 %v544, 64
    %v548 = vpop.permute.xlu0 %547
    %v550 = vmul.f32 %v543, %v548
    %552 = vrot.lane.b32.xlu0 %v550, 32
    %v553 = vpop.permute.xlu0 %552
    %v555 = vadd.f32 %v545, %v553
    %v556 = vtanh.pop %v555
    %558 = vrot.lane.b32.xlu0 %v556, 64
    %v559 = vpop.permute.xlu0 %558
    %v561 = vmul.f32 %v543, %v559
    %v562 = vld [vmem:[%s8] sm:$0x1]
    %v563 = vld [vmem:[#allocation3] sm:$0x1]
    %565 = vset.pattern.permute.xlu0 0
    %566 = vperm.xlu0 %565, %v563
    %v567 = vpop.permute.xlu0 %566
    %v569 = vperm.slane %v567, 0
    %571 = vrot.lane.b32.xlu0 %v561, 32
    %v572 = vpop.permute.xlu0 %571
    %v574 = vsel %vm255, %v562, 0
    %v576 = vsel %vm255, %v572, 0
    %578 = vmatpush.xpose.msra.mxu0 0.0
    %579 = vmatpush.xpose.msra.mxu0 0.0
    %580 = vmatpush.xpose.msra.mxu0 0.0
    %581 = vmatpush.xpose.msra.mxu0 0.0
    %582 = vmatpush.xpose.msra.mxu0 0.0
    %583 = vmatpush.xpose.msra.mxu0 0.0
    %584 = vmatpush.xpose.msra.mxu0 0.0
    %585 = vmatpush.xpose.msra.mxu0 0.0
    %586 = vmatpush.xpose.msra.mxu0 0.0
    %587 = vmatpush.xpose.msra.mxu0 0.0
    %588 = vmatpush.xpose.msra.mxu0 0.0
    %589 = vmatpush.xpose.msra.mxu0 0.0
    %590 = vmatpush.xpose.msra.mxu0 0.0
    %591 = vmatpush.xpose.msra.mxu0 0.0
    %592 = vmatpush.xpose.msra.mxu0 0.0
    %593 = vmatpush.xpose.msra.mxu0 %v576
    %594 = vmatmul.f32.gmra.mxu0 %v574
    %v595 = vpop.f32.mrf.mxu0
    %v596 = vadd.f32 %v569, %v595
    %597 = vdwg.mxu0
    %v598 = vxor.u32 %v596, 2147483648
    %v599 = vmul.f32 %v598, 1.442695
    %v600 = vpow.pop %v599
    %v601 = vadd.f32 %v600, 1.0
    %v602 = vrcp.pop %v601
    %v603 = vmul.f32 %v601, %v602
    %v604 = vsub.f32 1.0, %v603
    %v605 = vmul.f32 %v602, %v604
    %v606 = vadd.f32 %v602, %v605
    %vm607 = vweird.f32 %v601
    %vm608 = vweird.f32 %v602
    %vm609 = vmor %vm607, %vm608
    %v610 = vsel %vm609, %v602, %v606
    %v611 = vand.u32 2147483647, %v601
    %vm612 = vcmp.eq.f32.partialorder %v611, 8.507059e+37
    %v613 = vand.u32 %v601, 2147483648
    %v614 = vor.u32 1.1754944e-38, %v613
    %v615 = vsel %vm612, %v614, %v610
    %v616 = vmul.f32 1.0, %v615
    %vm617 = vcmask 57344
    %618 = vst.msk [vmem:[#allocation4] sm:$0x1] %vm617, %v616
    // Predicated region
    $region42: #{tpu_custom_call.1} parent=1 // pred_check
      _
    $region43: #{tpu_custom_call.1} parent=1 // pred_check_branch
      %620 = sbr.rel (0) target = $region45
    $region44: #{tpu_custom_call.1} parent=1 // pred_region
      %622 = vsyncadd [#allocation5], 0
      %s624 = sshll.u32 [#allocation4], 4
      %s625 = int_to_ptr.vmem [resolvable:$true] %s624
      %s626 = sshll.u32 %s10, 4
      %s627 = int_to_ptr.hbm [resolvable:$true] %s626
      %629 = dma.vmem_to_hbm [thread:$0]  %s625, 16, %s627, [#allocation5]
    $region45: #{tpu_custom_call.1} parent=1 // pred_fallthru
      _
    // Predicated region
    $region46: #{tpu_custom_call.1} parent=1 // pred_check
      _
    $region47: #{tpu_custom_call.1} parent=1 // pred_check_branch
      %631 = sbr.rel (0) target = $region49
    $region48: #{tpu_custom_call.1} parent=1 // pred_region
      %633 = dma.done [#allocation5], 16
    $region49: #{tpu_custom_call.1} parent=1 // pred_fallthru
      _
    %634 = vsyncpa [#allocation5], 1

</llo_original>
